<compile_context>
chip_gen: v7x
topology: tpu7x:2x2x1
jax: 0.10.0
libtpu: 0.0.40
codegen_flags: <defaults>
</compile_context>

<pallas_src>
import jax
import jax.numpy as jnp
from jax.experimental import pallas as pl
from jax.experimental.pallas import tpu as pltpu

HIDDEN = 40        # logical width of every Linear layer in the module
TILE_B_MAX = 4096  # max batch tile (amortizes per-step grid overhead)


def _round_up(a, m):
    return (a + m - 1) // m * m


def spatial16_kernel(x_ref, w1_ref, b1_ref, w2_ref, b2_ref, w3_ref, b3_ref, o_ref):
    # x_ref: (tile_b, n_in) f32; weights bf16 at their logical shapes;
    # biases f32 (1, 40); o_ref: (tile_b, 40) f32.
    x = x_ref[...].astype(jnp.bfloat16)

    # Layers 1 & 2: MXU bf16-in / f32-acc, bias add in f32, tanh in bf16
    # (result feeds the next bf16 matmul anyway -> halves EUP pushes on v6e/v7x).
    h = jnp.tanh(
        (jnp.dot(x, w1_ref[...], preferred_element_type=jnp.float32)
         + b1_ref[...]).astype(jnp.bfloat16))
    h = jnp.tanh(
        (jnp.dot(h, w2_ref[...], preferred_element_type=jnp.float32)
         + b2_ref[...]).astype(jnp.bfloat16))

    # Layer 3 + log-softmax in f32.  tanh bounds logits to [-1, 1], so no
    # max-subtraction is needed for numerical safety.
    h = jnp.tanh(
        jnp.dot(h, w3_ref[...], preferred_element_type=jnp.float32) + b3_ref[...])
    lse = jnp.log(jnp.sum(jnp.exp(h), axis=-1, keepdims=True))
    o_ref[...] = (h - lse).astype(o_ref.dtype)


def _prepare_params(params):
    """Weights -> bf16 (in, out) layout, biases -> f32 (1, out)."""
    w1, b1, w2, b2, w3, b3 = params
    wc = lambda w: jnp.asarray(w, jnp.bfloat16)
    bc = lambda b: jnp.asarray(b, jnp.float32).reshape(1, -1)
    return wc(w1), bc(b1), wc(w2), bc(b2), wc(w3), bc(b3)


def spatial16class_forward(x, params):
    """x: (B, n_inputs) float32.  params: (w1,b1,w2,b2,w3,b3) in (in, out) layout."""
    B, n_in = x.shape
    w1b, b1f, w2b, b2f, w3b, b3f = _prepare_params(params)

    # Batch tile: multiple of 8 (sublane), <= TILE_B_MAX, and small enough to
    # leave >= 2 grid steps whenever B allows it (keeps both v7x TCs busy).
    tile_b = min(TILE_B_MAX, max(8, _round_up(pl.cdiv(B, 2), 8)))
    grid = (pl.cdiv(B, tile_b),)   # boundary block handled by Pallas masking

    flops = 2 * B * (n_in * HIDDEN + 2 * HIDDEN * HIDDEN)
    transcendentals = B * (3 * HIDDEN + HIDDEN + 1)        # 3x tanh + exp + log
    bytes_accessed = (
        x.size * 4 + B * HIDDEN * 4                        # streamed input / output
        + (w1b.size + w2b.size + w3b.size) * 2 + 3 * HIDDEN * 4)  # resident params

    out = pl.pallas_call(
        spatial16_kernel,
        out_shape=jax.ShapeDtypeStruct((B, HIDDEN), jnp.float32),
        grid_spec=pltpu.PrefetchScalarGridSpec(
            num_scalar_prefetch=0,
            grid=grid,
            in_specs=[
                pl.BlockSpec((tile_b, n_in), lambda i: (i, 0)),   # streamed x tile
                pl.BlockSpec(w1b.shape, lambda i: (0, 0)),        # resident params
                pl.BlockSpec(b1f.shape, lambda i: (0, 0)),
                pl.BlockSpec(w2b.shape, lambda i: (0, 0)),
                pl.BlockSpec(b2f.shape, lambda i: (0, 0)),
                pl.BlockSpec(w3b.shape, lambda i: (0, 0)),
                pl.BlockSpec(b3f.shape, lambda i: (0, 0)),
            ],
            out_specs=pl.BlockSpec((tile_b, HIDDEN), lambda i: (i, 0)),
        ),
        compiler_params=pltpu.CompilerParams(
            dimension_semantics=("parallel",),
            vmem_limit_bytes=32 * 1024 * 1024),
        cost_estimate=pl.CostEstimate(
            flops=flops,
            transcendentals=transcendentals,
            bytes_accessed=bytes_accessed),
    )(x, w1b, b1f, w2b, b2f, w3b, b3f)

    return out


def init_params(key, n_inputs):
    """Deterministic init mimicking nn.Linear defaults (uniform +-1/sqrt(fan_in))."""
    def linear(k, fan_in, fan_out):
        kw, kb = jax.random.split(k)
        bound = 1.0 / jnp.sqrt(jnp.float32(fan_in))
        w = jax.random.uniform(kw, (fan_in, fan_out), jnp.float32, -bound, bound)
        b = jax.random.uniform(kb, (1, fan_out), jnp.float32, -bound, bound)
        return w, b

    k1, k2, k3 = jax.random.split(key, 3)
    w1, b1 = linear(k1, n_inputs, HIDDEN)
    w2, b2 = linear(k2, HIDDEN, HIDDEN)
    w3, b3 = linear(k3, HIDDEN, HIDDEN)
    return w1, b1, w2, b2, w3, b3


def reference_forward_f32(x, params):
    """Pure f32 reference matching the PyTorch module semantics."""
    w1, b1, w2, b2, w3, b3 = params
    h = jnp.tanh(x @ w1 + b1)
    h = jnp.tanh(h @ w2 + b2)
    h = jnp.tanh(h @ w3 + b3)
    return jax.nn.log_softmax(h, axis=-1)


def reference_forward_mirror(x, params):
    """Plain-JAX reference mirroring the kernel's precision choices exactly."""
    w1, b1, w2, b2, w3, b3 = params
    w1b, w2b, w3b = (w.astype(jnp.bfloat16) for w in (w1, w2, w3))
    b1f, b2f, b3f = (jnp.asarray(b, jnp.float32).reshape(1, -1) for b in (b1, b2, b3))
    h = jnp.tanh((jnp.dot(x.astype(jnp.bfloat16), w1b,
                          preferred_element_type=jnp.float32) + b1f).astype(jnp.bfloat16))
    h = jnp.tanh((jnp.dot(h, w2b,
                          preferred_element_type=jnp.float32) + b2f).astype(jnp.bfloat16))
    h = jnp.tanh(jnp.dot(h, w3b, preferred_element_type=jnp.float32) + b3f)
    return h - jnp.log(jnp.sum(jnp.exp(h), axis=-1, keepdims=True))


if __name__ == "__main__":
    key = jax.random.PRNGKey(0)
    k_x, k_p = jax.random.split(key)

    batch = 8
    n_inputs = 16  # "Spatial16" -> 16 input features
    x = jax.random.normal(k_x, (batch, n_inputs), jnp.float32)
    params = init_params(k_p, n_inputs)

    out = jax.block_until_ready(spatial16class_forward(x, params))
    assert out.shape == (batch, HIDDEN)

    # Rows of log-probs must exponentiate-and-sum to 1 (tight check).
    assert jnp.allclose(jnp.exp(out).sum(-1), 1.0, atol=1e-4)

    # Match the precision-mirroring reference (bf16 MXU / bf16 tanh layers 1-2).
    ref_mirror = reference_forward_mirror(x, params)
    assert jnp.allclose(out, ref_mirror, atol=1e-2, rtol=1e-2), "mismatch vs mirror ref"

    # Sanity check against the true f32 module semantics (bf16 rounding slack).
    ref_f32 = reference_forward_f32(x, params)
    assert jnp.allclose(out, ref_f32, atol=5e-2, rtol=5e-2), "mismatch vs f32 ref"

    print("KERNEL_OK")
</pallas_src>

<mosaic_0001>
module attributes {stable_mosaic.version = 11 : i64} {
  func.func @spatial16_kernel(%arg0: i32, %arg1: memref<8x16xf32, #tpu.memory_space<vmem>>, %arg2: memref<16x40xbf16, #tpu.memory_space<vmem>>, %arg3: memref<1x40xf32, #tpu.memory_space<vmem>>, %arg4: memref<40x40xbf16, #tpu.memory_space<vmem>>, %arg5: memref<1x40xf32, #tpu.memory_space<vmem>>, %arg6: memref<40x40xbf16, #tpu.memory_space<vmem>>, %arg7: memref<1x40xf32, #tpu.memory_space<vmem>>, %arg8: memref<8x40xf32, #tpu.memory_space<vmem>>) attributes {dimension_semantics = [#tpu.dimension_semantics<parallel>], iteration_bounds = array<i64: 1>, scalar_prefetch = 0 : i64, scratch_operands = 0 : i64, tpu.core_type = #tpu.core_type<tc>, window_params = [{transform_indices = @transform_0, window_bounds = array<i64: 8, 16>}, {pipeline_mode = #tpu.pipeline_mode<synchronous>, transform_indices = @transform_1, window_bounds = array<i64: 16, 40>}, {pipeline_mode = #tpu.pipeline_mode<synchronous>, transform_indices = @transform_2, window_bounds = array<i64: 1, 40>}, {pipeline_mode = #tpu.pipeline_mode<synchronous>, transform_indices = @transform_3, window_bounds = array<i64: 40, 40>}, {pipeline_mode = #tpu.pipeline_mode<synchronous>, transform_indices = @transform_4, window_bounds = array<i64: 1, 40>}, {pipeline_mode = #tpu.pipeline_mode<synchronous>, transform_indices = @transform_5, window_bounds = array<i64: 40, 40>}, {pipeline_mode = #tpu.pipeline_mode<synchronous>, transform_indices = @transform_6, window_bounds = array<i64: 1, 40>}, {transform_indices = @transform_7, window_bounds = array<i64: 8, 40>}]} {
    %c0 = arith.constant 0 : index
    %c0_0 = arith.constant 0 : index
    %0 = vector.load %arg1[%c0, %c0_0] : memref<8x16xf32, #tpu.memory_space<vmem>>, vector<8x16xf32>
    %1 = arith.truncf %0 : vector<8x16xf32> to vector<8x16xbf16>
    %c0_1 = arith.constant 0 : index
    %c0_2 = arith.constant 0 : index
    %2 = vector.load %arg2[%c0_1, %c0_2] : memref<16x40xbf16, #tpu.memory_space<vmem>>, vector<16x40xbf16>
    %cst = arith.constant dense<0.000000e+00> : vector<8x40xf32>
    %3 = tpu.matmul %1, %2, %cst {dimension_numbers = #tpu.dot_dimension_numbers<[1], [0], [0], [1], [0, 0, 1, 1], [], []>} : vector<8x16xbf16>, vector<16x40xbf16>, vector<8x40xf32> -> vector<8x40xf32>
    %c0_3 = arith.constant 0 : index
    %c0_4 = arith.constant 0 : index
    %4 = vector.load %arg3[%c0_3, %c0_4] : memref<1x40xf32, #tpu.memory_space<vmem>>, vector<1x40xf32>
    %5 = vector.broadcast %4 : vector<1x40xf32> to vector<8x40xf32>
    %6 = arith.addf %3, %5 : vector<8x40xf32>
    %7 = arith.truncf %6 : vector<8x40xf32> to vector<8x40xbf16>
    %8 = math.tanh %7 : vector<8x40xbf16>
    %c0_5 = arith.constant 0 : index
    %c0_6 = arith.constant 0 : index
    %9 = vector.load %arg4[%c0_5, %c0_6] : memref<40x40xbf16, #tpu.memory_space<vmem>>, vector<40x40xbf16>
    %cst_7 = arith.constant dense<0.000000e+00> : vector<8x40xf32>
    %10 = tpu.matmul %8, %9, %cst_7 {dimension_numbers = #tpu.dot_dimension_numbers<[1], [0], [0], [1], [0, 0, 1, 1], [], []>} : vector<8x40xbf16>, vector<40x40xbf16>, vector<8x40xf32> -> vector<8x40xf32>
    %c0_8 = arith.constant 0 : index
    %c0_9 = arith.constant 0 : index
    %11 = vector.load %arg5[%c0_8, %c0_9] : memref<1x40xf32, #tpu.memory_space<vmem>>, vector<1x40xf32>
    %12 = vector.broadcast %11 : vector<1x40xf32> to vector<8x40xf32>
    %13 = arith.addf %10, %12 : vector<8x40xf32>
    %14 = arith.truncf %13 : vector<8x40xf32> to vector<8x40xbf16>
    %15 = math.tanh %14 : vector<8x40xbf16>
    %c0_10 = arith.constant 0 : index
    %c0_11 = arith.constant 0 : index
    %16 = vector.load %arg6[%c0_10, %c0_11] : memref<40x40xbf16, #tpu.memory_space<vmem>>, vector<40x40xbf16>
    %cst_12 = arith.constant dense<0.000000e+00> : vector<8x40xf32>
    %17 = tpu.matmul %15, %16, %cst_12 {dimension_numbers = #tpu.dot_dimension_numbers<[1], [0], [0], [1], [0, 0, 1, 1], [], []>} : vector<8x40xbf16>, vector<40x40xbf16>, vector<8x40xf32> -> vector<8x40xf32>
    %c0_13 = arith.constant 0 : index
    %c0_14 = arith.constant 0 : index
    %18 = vector.load %arg7[%c0_13, %c0_14] : memref<1x40xf32, #tpu.memory_space<vmem>>, vector<1x40xf32>
    %19 = vector.broadcast %18 : vector<1x40xf32> to vector<8x40xf32>
    %20 = arith.addf %17, %19 : vector<8x40xf32>
    %21 = math.tanh %20 : vector<8x40xf32>
    %22 = math.exp %21 : vector<8x40xf32>
    %cst_15 = arith.constant dense<0.000000e+00> : vector<8xf32>
    %23 = vector.multi_reduction <add>, %22, %cst_15 [1] : vector<8x40xf32> to vector<8xf32>
    %24 = vector.shape_cast %23 : vector<8xf32> to vector<8x1xf32>
    %25 = math.log %24 : vector<8x1xf32>
    %26 = vector.broadcast %25 : vector<8x1xf32> to vector<8x40xf32>
    %27 = arith.subf %21, %26 : vector<8x40xf32>
    %c0_16 = arith.constant 0 : index
    %c0_17 = arith.constant 0 : index
    %28 = vector.load %arg8[%c0_16, %c0_17] : memref<8x40xf32, #tpu.memory_space<vmem>>, vector<8x40xf32>
    tpu.vector_store %arg8[%c0_16, %c0_17], %27 {strides = array<i32>} : memref<8x40xf32, #tpu.memory_space<vmem>>, vector<8x40xf32>,
    return
  }
  func.func @transform_0(%arg0: i32) -> (i32, i32) {
    %c0_i32 = arith.constant 0 : i32
    %c0_i32_0 = arith.constant 0 : i32
    return %arg0, %c0_i32 : i32, i32
  }
  func.func @transform_1(%arg0: i32) -> (i32, i32) {
    %c0_i32 = arith.constant 0 : i32
    %c0_i32_0 = arith.constant 0 : i32
    %c0_i32_1 = arith.constant 0 : i32
    return %c0_i32, %c0_i32_0 : i32, i32
  }
  func.func @transform_2(%arg0: i32) -> (i32, i32) {
    %c0_i32 = arith.constant 0 : i32
    %c0_i32_0 = arith.constant 0 : i32
    %c0_i32_1 = arith.constant 0 : i32
    return %c0_i32, %c0_i32_0 : i32, i32
  }
  func.func @transform_3(%arg0: i32) -> (i32, i32) {
    %c0_i32 = arith.constant 0 : i32
    %c0_i32_0 = arith.constant 0 : i32
    %c0_i32_1 = arith.constant 0 : i32
    return %c0_i32, %c0_i32_0 : i32, i32
  }
  func.func @transform_4(%arg0: i32) -> (i32, i32) {
    %c0_i32 = arith.constant 0 : i32
    %c0_i32_0 = arith.constant 0 : i32
    %c0_i32_1 = arith.constant 0 : i32
    return %c0_i32, %c0_i32_0 : i32, i32
  }
  func.func @transform_5(%arg0: i32) -> (i32, i32) {
    %c0_i32 = arith.constant 0 : i32
    %c0_i32_0 = arith.constant 0 : i32
    %c0_i32_1 = arith.constant 0 : i32
    return %c0_i32, %c0_i32_0 : i32, i32
  }
  func.func @transform_6(%arg0: i32) -> (i32, i32) {
    %c0_i32 = arith.constant 0 : i32
    %c0_i32_0 = arith.constant 0 : i32
    %c0_i32_1 = arith.constant 0 : i32
    return %c0_i32, %c0_i32_0 : i32, i32
  }
  func.func @transform_7(%arg0: i32) -> (i32, i32) {
    %c0_i32 = arith.constant 0 : i32
    %c0_i32_0 = arith.constant 0 : i32
    return %arg0, %c0_i32 : i32, i32
  }
}

</mosaic_0001>

<llo_original>
// kernel: tpu_custom_call.1
$region0: #{tpu_custom_call.1}
  #allocation0 [shape = 'u32[]', space=smem, size = 0x4, offset = 0x4, fixed_abs, tag = 'smem constant byte address 0x4 - core index']
  #allocation1 [shape = 'u32[144,128]{1,0:T(1,128)}', space=vmem, size = 0x12000, scoped, tag = 'internal scratch']
  %s0 = inlined_call_operand.hbm [shape: f32[8,16], index: 0, kind: input, shape index: {}]
  %s1 = inlined_call_operand.hbm [shape: bf16[16,40], index: 1, kind: input, shape index: {}]
  %s2 = inlined_call_operand.vmem [shape: f32[1,40], index: 2, kind: input, shape index: {}]
  %s3 = inlined_call_operand.hbm [shape: bf16[40,40], index: 3, kind: input, shape index: {}]
  %s4 = inlined_call_operand.vmem [shape: f32[1,40], index: 4, kind: input, shape index: {}]
  %s5 = inlined_call_operand.hbm [shape: bf16[40,40], index: 5, kind: input, shape index: {}]
  %s6 = inlined_call_operand.vmem [shape: f32[1,40], index: 6, kind: input, shape index: {}]
  %s7 = inlined_call_operand.hbm [shape: f32[8,40], index: 7, kind: output, shape index: {}]
  %s8 = sld [smem:[#allocation0]]
  $region54: #{tpu_custom_call.1} parent=0
    _
  %s10 = ssub.s32 1, %s8
  %s11 = scalar_select 0, %s10, %s8
  $region1: #{tpu_custom_call.1} parent=0
    #allocation2 [shape = 'u8[4096]{0}', space=vmem, size = 0x1000, scoped, tag = 'input window, operand 0, single buffered']
    #allocation3 [shape = 's32[1]{0}', space=sflag, size = 0x4, scoped, tag = 'scoped memory for tpu_custom_call.1']
    #allocation4 [shape = 's32[1]{0}', space=sflag, size = 0x4, scoped, tag = 'scoped memory for tpu_custom_call.1']
    #allocation5 [shape = 'u8[4096]{0}', space=vmem, size = 0x1000, scoped, tag = 'input window, operand 1, single buffered']
    #allocation6 [shape = 's32[1]{0}', space=sflag, size = 0x4, scoped, tag = 'scoped memory for tpu_custom_call.1']
    #allocation7 [shape = 'u8[10240]{0}', space=vmem, size = 0x2800, scoped, tag = 'input window, operand 3, single buffered']
    #allocation8 [shape = 'u8[10240]{0}', space=vmem, size = 0x2800, scoped, tag = 'input window, operand 5, single buffered']
    #allocation9 [shape = 's32[1]{0}', space=sflag, size = 0x4, scoped, tag = 'scoped memory for tpu_custom_call.1']
    #allocation10 [shape = 'u8[4096]{0}', space=vmem, size = 0x1000, scoped, tag = 'output window, operand 0, single buffered']
    %12 = vsyncpa [#allocation3], 0
    %13 = vsyncpa [#allocation6], 0
    %14 = vsyncpa [#allocation9], 0
    %15 = vsyncpa [#allocation4], 0
    // Predicated region
    $region2: #{tpu_custom_call.1} parent=1 // pred_check
      _
    $region3: #{tpu_custom_call.1} parent=1 // pred_check_branch
      %17 = sbr.rel (0) target = $region5
    $region4: #{tpu_custom_call.1} parent=1 // pred_region
      %s19 = ssub.s32 128, 128
      %20 = vsyncadd [#allocation3], %s19
      %s22 = sshll.u32 [#allocation2], 4
      %s23 = int_to_ptr.vmem [resolvable:$true] %s22
      %25 = dma.hbm_to_vmem [thread:$0]  %s0, 128, %s23, [#allocation3]
    $region5: #{tpu_custom_call.1} parent=1 // pred_fallthru
      _
    // Predicated region
    $region6: #{tpu_custom_call.1} parent=1 // pred_check
      _
    $region7: #{tpu_custom_call.1} parent=1 // pred_check_branch
      %27 = sbr.rel (0) target = $region9
    $region8: #{tpu_custom_call.1} parent=1 // pred_region
      %s29 = ssub.s32 128, 128
      %30 = vsyncadd [#allocation6], %s29
      %s31 = sshll.u32 [#allocation5], 4
      %s32 = int_to_ptr.vmem [resolvable:$true] %s31
      %37 = dma.hbm_to_vmem [thread:$0]  %s1, 128, %s32, [#allocation6], 64, 64, 4
    $region9: #{tpu_custom_call.1} parent=1 // pred_fallthru
      _
    // Predicated region
    $region10: #{tpu_custom_call.1} parent=1 // pred_check
      _
    $region11: #{tpu_custom_call.1} parent=1 // pred_check_branch
      %39 = sbr.rel (0) target = $region13
    $region12: #{tpu_custom_call.1} parent=1 // pred_region
      _
    $region13: #{tpu_custom_call.1} parent=1 // pred_fallthru
      _
    // Predicated region
    $region14: #{tpu_custom_call.1} parent=1 // pred_check
      _
    $region15: #{tpu_custom_call.1} parent=1 // pred_check_branch
      %41 = sbr.rel (0) target = $region17
    $region16: #{tpu_custom_call.1} parent=1 // pred_region
      %s43 = ssub.s32 320, 320
      %44 = vsyncadd [#allocation6], %s43
      %s45 = sshll.u32 [#allocation7], 4
      %s46 = int_to_ptr.vmem [resolvable:$true] %s45
      %51 = dma.hbm_to_vmem [thread:$0]  %s3, 320, %s46, [#allocation6], 64, 64, 4
    $region17: #{tpu_custom_call.1} parent=1 // pred_fallthru
      _
    // Predicated region
    $region18: #{tpu_custom_call.1} parent=1 // pred_check
      _
    $region19: #{tpu_custom_call.1} parent=1 // pred_check_branch
      %53 = sbr.rel (0) target = $region21
    $region20: #{tpu_custom_call.1} parent=1 // pred_region
      _
    $region21: #{tpu_custom_call.1} parent=1 // pred_fallthru
      _
    // Predicated region
    $region22: #{tpu_custom_call.1} parent=1 // pred_check
      _
    $region23: #{tpu_custom_call.1} parent=1 // pred_check_branch
      %55 = sbr.rel (0) target = $region25
    $region24: #{tpu_custom_call.1} parent=1 // pred_region
      %s57 = ssub.s32 320, 320
      %58 = vsyncadd [#allocation9], %s57
      %s59 = sshll.u32 [#allocation8], 4
      %s60 = int_to_ptr.vmem [resolvable:$true] %s59
      %65 = dma.hbm_to_vmem [thread:$0]  %s5, 320, %s60, [#allocation9], 64, 64, 4
    $region25: #{tpu_custom_call.1} parent=1 // pred_fallthru
      _
    // Predicated region
    $region26: #{tpu_custom_call.1} parent=1 // pred_check
      _
    $region27: #{tpu_custom_call.1} parent=1 // pred_check_branch
      %67 = sbr.rel (0) target = $region29
    $region28: #{tpu_custom_call.1} parent=1 // pred_region
      _
    $region29: #{tpu_custom_call.1} parent=1 // pred_fallthru
      _
    // Predicated region
    $region30: #{tpu_custom_call.1} parent=1 // pred_check
      _
    $region31: #{tpu_custom_call.1} parent=1 // pred_check_branch
      %69 = sbr.rel (0) target = $region33
    $region32: #{tpu_custom_call.1} parent=1 // pred_region
      %70 = dma.done [#allocation3], 128
    $region33: #{tpu_custom_call.1} parent=1 // pred_fallthru
      _
    // Predicated region
    $region34: #{tpu_custom_call.1} parent=1 // pred_check
      _
    $region35: #{tpu_custom_call.1} parent=1 // pred_check_branch
      %72 = sbr.rel (0) target = $region37
    $region36: #{tpu_custom_call.1} parent=1 // pred_region
      %73 = dma.done [#allocation6], 128
    $region37: #{tpu_custom_call.1} parent=1 // pred_fallthru
      _
    // Predicated region
    $region38: #{tpu_custom_call.1} parent=1 // pred_check
      _
    $region39: #{tpu_custom_call.1} parent=1 // pred_check_branch
      %75 = sbr.rel (0) target = $region41
    $region40: #{tpu_custom_call.1} parent=1 // pred_region
      %76 = dma.done [#allocation6], 320
    $region41: #{tpu_custom_call.1} parent=1 // pred_fallthru
      _
    // Predicated region
    $region42: #{tpu_custom_call.1} parent=1 // pred_check
      _
    $region43: #{tpu_custom_call.1} parent=1 // pred_check_branch
      %78 = sbr.rel (0) target = $region45
    $region44: #{tpu_custom_call.1} parent=1 // pred_region
      %79 = dma.done [#allocation9], 320
    $region45: #{tpu_custom_call.1} parent=1 // pred_fallthru
      _
    %v81 = vld [vmem:[#allocation2] sm:$0xff]
    %v82 = vpack.c.bf16 %v81, %v81
    %v83 = vld [vmem:[#allocation5] sm:$0xf]
    %v84 = vld [vmem:[#allocation5 + $0x4] sm:$0xf]
    %v85 = vld [vmem:[%s2] sm:$0x1]
    %v87 = vlaneseq
    %v88 = vshrl.u32 %v87, 7
    %v89 = vsub.s32 0, %v88
    %v90 = vrot.slane %v85, %v89
    %v94 = vunpack.c.l.b16 %v83
    %v95 = vunpack.c.l.b16 %v84
    %v96 = vpack.c.b16 %v95, %v94
    %vm98 = vcmask 130048
    %v100 = vsel %vm98, %v82, 0
    %102 = vmatprep.subr.bf16.mxu0 0
    %103 = vmatpush1.bf16.msra.mxu0 %v96
    %104 = vmatprep.subr.bf16.mxu0 0
    %105 = vmatpush1.bf16.msra.mxu0 0
    %106 = vmatprep.subr.bf16.mxu0 0
    %107 = vmatpush1.bf16.msra.mxu0 0
    %108 = vmatprep.subr.bf16.mxu0 0
    %109 = vmatpush1.bf16.msra.mxu0 0
    %110 = vmatprep.subr.bf16.mxu0 0
    %111 = vmatpush1.bf16.msra.mxu0 0
    %112 = vmatprep.subr.bf16.mxu0 0
    %113 = vmatpush1.bf16.msra.mxu0 0
    %114 = vmatprep.subr.bf16.mxu0 0
    %115 = vmatpush1.bf16.msra.mxu0 0
    %116 = vmatprep.subr.bf16.mxu0 0
    %117 = vmatpush1.bf16.msra.mxu0 0
    %118 = vmatprep.subr.bf16.mxu0 0
    %119 = vmatpush1.bf16.msra.mxu0 0
    %120 = vmatprep.subr.bf16.mxu0 0
    %121 = vmatpush1.bf16.msra.mxu0 0
    %122 = vmatprep.subr.bf16.mxu0 0
    %123 = vmatpush1.bf16.msra.mxu0 0
    %124 = vmatprep.subr.bf16.mxu0 0
    %125 = vmatpush1.bf16.msra.mxu0 0
    %126 = vmatprep.subr.bf16.mxu0 0
    %127 = vmatpush1.bf16.msra.mxu0 0
    %128 = vmatprep.subr.bf16.mxu0 0
    %129 = vmatpush1.bf16.msra.mxu0 0
    %130 = vmatprep.subr.bf16.mxu0 0
    %131 = vmatpush1.bf16.msra.mxu0 0
    %132 = vmatprep.subr.bf16.mxu0 0
    %133 = vmatpush1.bf16.msra.mxu0 0
    %134 = vmatprep.mubr.bf16.mxu0 0
    %135 = vmatmul.mubr.bf16.gmra.mrb[0].mxu0 %v100
    %v136 = vpop.f32.mrb[0].mxu0
    %v137 = vadd.f32 %v90, %v136
    %v138 = vpop.f32.mrb[0].mxu0
    %v139 = vpop.f32.mrb[0].mxu0
    %v140 = vpop.f32.mrb[0].mxu0
    %141 = vdwg.mxu0
    %v142 = vpack.c.bf16 %v137, %v137
    %v143 = vtanh.bf16.pop %v142
    %v144 = vld [vmem:[#allocation7] sm:$0xf]
    %v145 = vld [vmem:[#allocation7 + $0x4] sm:$0xf]
    %v146 = vld [vmem:[#allocation7 + $0x8] sm:$0xf]
    %v147 = vld [vmem:[#allocation7 + $0xc] sm:$0xf]
    %v148 = vld [vmem:[#allocation7 + $0x10] sm:$0xf]
    %v149 = vld [vmem:[%s4] sm:$0x1]
    %v151 = vlaneseq
    %v152 = vshrl.u32 %v151, 7
    %v153 = vsub.s32 0, %v152
    %v154 = vrot.slane %v149, %v153
    %v161 = vunpack.c.l.b16 %v144
    %v162 = vunpack.c.l.b16 %v145
    %v163 = vunpack.c.l.b16 %v146
    %v164 = vunpack.c.l.b16 %v147
    %v165 = vunpack.c.l.b16 %v148
    %v166 = vpack.c.b16 %v162, %v161
    %v167 = vpack.c.b16 %v164, %v163
    %v168 = vpack.c.b16 %v165, %v165
    %vm171 = vcmask 326656
    %v173 = vsel %vm171, %v143, 0
    %vm175 = vcmask 1043456
    %v177 = vsel %vm175, %v168, 0
    %179 = vmatprep.subr.bf16.mxu0 0
    %180 = vmatpush1.bf16.msra.mxu0 %v166
    %181 = vmatprep.subr.bf16.mxu0 0
    %182 = vmatpush1.bf16.msra.mxu0 %v167
    %183 = vmatprep.subr.bf16.mxu0 0
    %184 = vmatpush1.bf16.msra.mxu0 %v177
    %185 = vmatprep.subr.bf16.mxu0 0
    %186 = vmatpush1.bf16.msra.mxu0 0
    %187 = vmatprep.subr.bf16.mxu0 0
    %188 = vmatpush1.bf16.msra.mxu0 0
    %189 = vmatprep.subr.bf16.mxu0 0
    %190 = vmatpush1.bf16.msra.mxu0 0
    %191 = vmatprep.subr.bf16.mxu0 0
    %192 = vmatpush1.bf16.msra.mxu0 0
    %193 = vmatprep.subr.bf16.mxu0 0
    %194 = vmatpush1.bf16.msra.mxu0 0
    %195 = vmatprep.subr.bf16.mxu0 0
    %196 = vmatpush1.bf16.msra.mxu0 0
    %197 = vmatprep.subr.bf16.mxu0 0
    %198 = vmatpush1.bf16.msra.mxu0 0
    %199 = vmatprep.subr.bf16.mxu0 0
    %200 = vmatpush1.bf16.msra.mxu0 0
    %201 = vmatprep.subr.bf16.mxu0 0
    %202 = vmatpush1.bf16.msra.mxu0 0
    %203 = vmatprep.subr.bf16.mxu0 0
    %204 = vmatpush1.bf16.msra.mxu0 0
    %205 = vmatprep.subr.bf16.mxu0 0
    %206 = vmatpush1.bf16.msra.mxu0 0
    %207 = vmatprep.subr.bf16.mxu0 0
    %208 = vmatpush1.bf16.msra.mxu0 0
    %209 = vmatprep.subr.bf16.mxu0 0
    %210 = vmatpush1.bf16.msra.mxu0 0
    %211 = vmatprep.mubr.bf16.mxu0 0
    %212 = vmatmul.mubr.bf16.gmra.mrb[0].mxu0 %v173
    %v213 = vpop.f32.mrb[0].mxu0
    %v214 = vadd.f32 %v154, %v213
    %v215 = vpop.f32.mrb[0].mxu0
    %v216 = vpop.f32.mrb[0].mxu0
    %v217 = vpop.f32.mrb[0].mxu0
    %218 = vdwg.mxu0
    %v219 = vpack.c.bf16 %v214, %v214
    %v220 = vtanh.bf16.pop %v219
    %v221 = vld [vmem:[#allocation8] sm:$0xf]
    %v222 = vld [vmem:[#allocation8 + $0x4] sm:$0xf]
    %v223 = vld [vmem:[#allocation8 + $0x8] sm:$0xf]
    %v224 = vld [vmem:[#allocation8 + $0xc] sm:$0xf]
    %v225 = vld [vmem:[#allocation8 + $0x10] sm:$0xf]
    %v226 = vld [vmem:[%s6] sm:$0x1]
    %v228 = vlaneseq
    %v229 = vshrl.u32 %v228, 7
    %v230 = vsub.s32 0, %v229
    %v231 = vrot.slane %v226, %v230
    %v238 = vunpack.c.l.b16 %v221
    %v239 = vunpack.c.l.b16 %v222
    %v240 = vunpack.c.l.b16 %v223
    %v241 = vunpack.c.l.b16 %v224
    %v242 = vunpack.c.l.b16 %v225
    %v243 = vpack.c.b16 %v239, %v238
    %v244 = vpack.c.b16 %v241, %v240
    %v245 = vpack.c.b16 %v242, %v242
    %v249 = vsel %vm171, %v220, 0
    %v252 = vsel %vm175, %v245, 0
    %254 = vmatprep.subr.bf16.mxu0 0
    %255 = vmatpush1.bf16.msra.mxu0 %v243
    %256 = vmatprep.subr.bf16.mxu0 0
    %257 = vmatpush1.bf16.msra.mxu0 %v244
    %258 = vmatprep.subr.bf16.mxu0 0
    %259 = vmatpush1.bf16.msra.mxu0 %v252
    %260 = vmatprep.subr.bf16.mxu0 0
    %261 = vmatpush1.bf16.msra.mxu0 0
    %262 = vmatprep.subr.bf16.mxu0 0
    %263 = vmatpush1.bf16.msra.mxu0 0
    %264 = vmatprep.subr.bf16.mxu0 0
    %265 = vmatpush1.bf16.msra.mxu0 0
    %266 = vmatprep.subr.bf16.mxu0 0
    %267 = vmatpush1.bf16.msra.mxu0 0
    %268 = vmatprep.subr.bf16.mxu0 0
    %269 = vmatpush1.bf16.msra.mxu0 0
    %270 = vmatprep.subr.bf16.mxu0 0
    %271 = vmatpush1.bf16.msra.mxu0 0
    %272 = vmatprep.subr.bf16.mxu0 0
    %273 = vmatpush1.bf16.msra.mxu0 0
    %274 = vmatprep.subr.bf16.mxu0 0
    %275 = vmatpush1.bf16.msra.mxu0 0
    %276 = vmatprep.subr.bf16.mxu0 0
    %277 = vmatpush1.bf16.msra.mxu0 0
    %278 = vmatprep.subr.bf16.mxu0 0
    %279 = vmatpush1.bf16.msra.mxu0 0
    %280 = vmatprep.subr.bf16.mxu0 0
    %281 = vmatpush1.bf16.msra.mxu0 0
    %282 = vmatprep.subr.bf16.mxu0 0
    %283 = vmatpush1.bf16.msra.mxu0 0
    %284 = vmatprep.subr.bf16.mxu0 0
    %285 = vmatpush1.bf16.msra.mxu0 0
    %286 = vmatprep.mubr.bf16.mxu0 0
    %287 = vmatmul.mubr.bf16.gmra.mrb[0].mxu0 %v249
    %v288 = vpop.f32.mrb[0].mxu0
    %v289 = vadd.f32 %v231, %v288
    %v290 = vpop.f32.mrb[0].mxu0
    %v291 = vpop.f32.mrb[0].mxu0
    %v292 = vpop.f32.mrb[0].mxu0
    %293 = vdwg.mxu0
    %v294 = vtanh.pop %v289
    %v295 = vmul.f32 %v294, 1.442695
    %v296 = vpow.pop %v295
    %v297 = vsel %vm171, %v296, 0.0
    %298 = vadd.xlane.f32.xlu0 %v297
    %v299 = vpop.xlane.xlu0 %298
    %v300 = vlog2.pop %v299
    %v301 = vmul.f32 %v300, 0.6931472
    %v302 = vsub.f32 %v294, %v301
    %303 = vst.msk [vmem:[#allocation10] sm:$0xff] %vm171, %v302
    // Predicated region
    $region46: #{tpu_custom_call.1} parent=1 // pred_check
      _
    $region47: #{tpu_custom_call.1} parent=1 // pred_check_branch
      %305 = sbr.rel (0) target = $region49
    $region48: #{tpu_custom_call.1} parent=1 // pred_region
      %s307 = ssub.s32 128, 128
      %308 = vsyncadd [#allocation4], %s307
      %s310 = sshll.u32 [#allocation10], 4
      %s311 = int_to_ptr.vmem [resolvable:$true] %s310
      %313 = dma.vmem_to_hbm [thread:$0]  %s311, 128, %s7, [#allocation4]
    $region49: #{tpu_custom_call.1} parent=1 // pred_fallthru
      _
    // Predicated region
    $region50: #{tpu_custom_call.1} parent=1 // pred_check
      _
    $region51: #{tpu_custom_call.1} parent=1 // pred_check_branch
      %315 = sbr.rel (0) target = $region53
    $region52: #{tpu_custom_call.1} parent=1 // pred_region
      %316 = dma.done [#allocation4], 128
    $region53: #{tpu_custom_call.1} parent=1 // pred_fallthru
      _
    %317 = vsyncpa [#allocation3], 1
    %318 = vsyncpa [#allocation6], 1
    %319 = vsyncpa [#allocation9], 1
    %320 = vsyncpa [#allocation4], 1

</llo_original>
